<compile_context>
chip_gen: v7x
topology: tpu7x:2x2x1
jax: 0.10.0
libtpu: 0.0.40
codegen_flags: <defaults>
</compile_context>

<pallas_src>
import functools

import jax
import jax.numpy as jnp
from jax.experimental import pallas as pl
from jax.experimental.pallas import tpu as pltpu

BN_EPS = 1e-3                         # nn.BatchNorm1d(eps=0.001)
_DEFAULT_TILE_N = 4096                # ~6 MiB of double-buffered tiles at C_in=32 / C_out=64
_VMEM_LIMIT_BYTES = 32 * 1024 * 1024  # fits every generation (v7x physical = 64 MiB)


def _pick_tile_n(n):
    return n if n <= _DEFAULT_TILE_N else _DEFAULT_TILE_N


# ---------------------------------------------------------------------------
# Kernels
# ---------------------------------------------------------------------------
def _bn_stats_kernel(x_ref, w_ref, sum_ref, sumsq_ref, *, n_rows, tile_n):
    """Pass 1: accumulate per-channel sum(y) and sum(y*y) across all row tiles."""
    i = pl.program_id(0)

    @pl.when(i == 0)
    def _init():
        sum_ref[...] = jnp.zeros_like(sum_ref)
        sumsq_ref[...] = jnp.zeros_like(sumsq_ref)

    y = jnp.dot(x_ref[...], w_ref[...], preferred_element_type=jnp.float32)

    if n_rows % tile_n != 0:
        # Last tile is partial: zero the padded rows before reducing so the
        # batch statistics stay exact.
        row = i * tile_n + jax.lax.broadcasted_iota(jnp.int32, y.shape, 0)
        y = jnp.where(row < n_rows, y, 0.0)

    # Column reductions as ones-vector matmuls (MXU) instead of cross-sublane
    # XLU reductions; keeps accumulation in f32.
    ones = jnp.ones((1, y.shape[0]), dtype=jnp.float32)
    sum_ref[...] += jnp.dot(ones, y, preferred_element_type=jnp.float32)
    sumsq_ref[...] += jnp.dot(ones, y * y, preferred_element_type=jnp.float32)


def _linear_affine_relu_kernel(x_ref, w_ref, scale_ref, shift_ref, o_ref):
    """Pass 2 (and bn=False path): o = relu((x @ W) * scale + shift)."""
    y = jnp.dot(x_ref[...], w_ref[...], preferred_element_type=jnp.float32)
    y = y * scale_ref[...] + shift_ref[...]
    o_ref[...] = jnp.maximum(y, 0.0).astype(o_ref.dtype)


# ---------------------------------------------------------------------------
# Wrapper
# ---------------------------------------------------------------------------
@functools.partial(jax.jit, static_argnames=("bn", "tile_n"))
def conv1d_forward(x, weight, gamma_or_bias, beta=None, *, bn=True, tile_n=None):
    """x: (N, C_in).  weight: (C_in, C_out) (= nn.Linear.weight.T).

    bn=True : gamma_or_bias = BN weight, beta = BN bias (shape (C_out,) or (1, C_out)).
    bn=False: gamma_or_bias = linear bias, beta ignored.
    """
    n, c_in = x.shape
    c_out = weight.shape[1]
    tile = _pick_tile_n(n) if tile_n is None else tile_n
    grid = (pl.cdiv(n, tile),)

    x_spec = pl.BlockSpec((tile, c_in), lambda i: (i, 0))
    w_spec = pl.BlockSpec((c_in, c_out), lambda i: (0, 0))          # constant block
    vec_spec = pl.BlockSpec((1, c_out), lambda i: (0, 0))           # constant block
    out_spec = pl.BlockSpec((tile, c_out), lambda i: (i, 0))

    itemsize = x.dtype.itemsize
    matmul_flops = 2 * n * c_in * c_out
    w_bytes = weight.size * weight.dtype.itemsize

    if bn:
        gamma = gamma_or_bias.reshape(-1).astype(jnp.float32)
        beta_v = beta.reshape(-1).astype(jnp.float32)

        # ---- Pass 1: batch statistics (reduction over N -> "arbitrary"). ----
        sums, sumsqs = pl.pallas_call(
            functools.partial(_bn_stats_kernel, n_rows=n, tile_n=tile),
            out_shape=(
                jax.ShapeDtypeStruct((1, c_out), jnp.float32),
                jax.ShapeDtypeStruct((1, c_out), jnp.float32),
            ),
            grid=grid,
            in_specs=[x_spec, w_spec],
            out_specs=(vec_spec, vec_spec),
            compiler_params=pltpu.CompilerParams(
                dimension_semantics=("arbitrary",),
                vmem_limit_bytes=_VMEM_LIMIT_BYTES,
            ),
            cost_estimate=pl.CostEstimate(
                flops=matmul_flops + 6 * n * c_out,
                transcendentals=0,
                bytes_accessed=n * c_in * itemsize + w_bytes + 2 * c_out * 4,
            ),
        )(x, weight)

        # Tiny JAX epilogue: fold batch stats + gamma/beta into per-channel
        # scale/shift (f32 throughout, variance clamped at zero).
        inv_n = 1.0 / jnp.float32(n)
        mean = sums[0] * inv_n
        var = jnp.maximum(sumsqs[0] * inv_n - mean * mean, 0.0)
        scale = gamma * jax.lax.rsqrt(var + BN_EPS)
        shift = beta_v - mean * scale
        # TODO(synk): training parity would also update BatchNorm running_mean /
        # running_var (momentum=0.01) from `mean` / `var`; not emitted here.
    else:
        scale = jnp.ones((c_out,), jnp.float32)
        shift = gamma_or_bias.reshape(-1).astype(jnp.float32)

    scale = scale.reshape(1, c_out)
    shift = shift.reshape(1, c_out)

    # ---- Pass 2 (independent row tiles -> "parallel", 2x on v7x megacore). ----
    # TODO(synk): for a stack of consecutive Conv1d layers, fuse them into one
    # kernel keeping the (TILE_N, C) activations in VMEM between layers (and
    # make the final output lane-dense) to kill inter-layer HBM roundtrips.
    return pl.pallas_call(
        _linear_affine_relu_kernel,
        out_shape=jax.ShapeDtypeStruct((n, c_out), x.dtype),
        grid=grid,
        in_specs=[x_spec, w_spec, vec_spec, vec_spec],
        out_specs=out_spec,
        compiler_params=pltpu.CompilerParams(
            dimension_semantics=("parallel",),
            vmem_limit_bytes=_VMEM_LIMIT_BYTES,
        ),
        cost_estimate=pl.CostEstimate(
            flops=matmul_flops + 3 * n * c_out,
            transcendentals=0,
            bytes_accessed=n * c_in * itemsize + w_bytes
            + n * c_out * itemsize + 2 * c_out * 4,
        ),
    )(x, weight, scale, shift)


# ---------------------------------------------------------------------------
# Reference (pure JAX)
# ---------------------------------------------------------------------------
def _reference(x, weight, gamma, beta, bn=True):
    y = x @ weight
    if bn:
        mean = y.mean(0, keepdims=True)
        var = ((y - mean) ** 2).mean(0, keepdims=True)
        y = (y - mean) / jnp.sqrt(var + BN_EPS) * gamma + beta
    else:
        y = y + gamma
    return jnp.maximum(y, 0.0)


# ---------------------------------------------------------------------------
# Demo
# ---------------------------------------------------------------------------
if __name__ == "__main__":
    key = jax.random.PRNGKey(0)
    N, C_IN, C_OUT = 128, 32, 64

    kx, kw, kb = jax.random.split(key, 3)
    x = jax.random.normal(kx, (N, C_IN), dtype=jnp.float32)

    # nn.Linear-style init: U(-1/sqrt(in), 1/sqrt(in)), stored as (C_in, C_out).
    bound = 1.0 / jnp.sqrt(jnp.float32(C_IN))
    weight = jax.random.uniform(kw, (C_IN, C_OUT), jnp.float32, -bound, bound)
    # BatchNorm1d init: weight=1, bias=0.
    gamma = jnp.ones((1, C_OUT), jnp.float32)
    beta = jnp.zeros((1, C_OUT), jnp.float32)

    # bn=True, default (single-tile) path.
    out = jax.block_until_ready(conv1d_forward(x, weight, gamma, beta, bn=True))
    ref = _reference(x, weight, gamma, beta, bn=True)
    assert out.shape == (N, C_OUT)
    assert jnp.allclose(out, ref, atol=1e-4, rtol=1e-4), "mismatch (bn=True)"

    # bn=True, forced multi-tile path with a partial last tile:
    # exercises the cross-tile stats accumulation and row masking.
    out_tiled = jax.block_until_ready(
        conv1d_forward(x, weight, gamma, beta, bn=True, tile_n=48))
    assert jnp.allclose(out_tiled, ref, atol=1e-4, rtol=1e-4), "mismatch (tiled bn=True)"

    # bn=False: linear + bias + ReLU (same pass-2 kernel, scale=1).
    bias = jax.random.uniform(kb, (1, C_OUT), jnp.float32, -bound, bound)
    out2 = jax.block_until_ready(conv1d_forward(x, weight, bias, bn=False))
    ref2 = _reference(x, weight, bias, beta, bn=False)
    assert jnp.allclose(out2, ref2, atol=1e-4, rtol=1e-4), "mismatch (bn=False)"

    print("KERNEL_OK")
</pallas_src>

<mosaic_0001>
module attributes {stable_mosaic.version = 11 : i64} {
  func.func @_linear_affine_relu_kernel(%arg0: i32, %arg1: memref<128x32xf32, #tpu.memory_space<vmem>>, %arg2: memref<32x64xf32, #tpu.memory_space<vmem>>, %arg3: memref<1x64xf32, #tpu.memory_space<vmem>>, %arg4: memref<1x64xf32, #tpu.memory_space<vmem>>, %arg5: memref<128x64xf32, #tpu.memory_space<vmem>>) attributes {dimension_semantics = [#tpu.dimension_semantics<parallel>], iteration_bounds = array<i64: 1>, scalar_prefetch = 0 : i64, scratch_operands = 0 : i64, tpu.core_type = #tpu.core_type<tc>, window_params = [{transform_indices = @transform_0, window_bounds = array<i64: 128, 32>}, {pipeline_mode = #tpu.pipeline_mode<synchronous>, transform_indices = @transform_1, window_bounds = array<i64: 32, 64>}, {pipeline_mode = #tpu.pipeline_mode<synchronous>, transform_indices = @transform_2, window_bounds = array<i64: 1, 64>}, {pipeline_mode = #tpu.pipeline_mode<synchronous>, transform_indices = @transform_3, window_bounds = array<i64: 1, 64>}, {transform_indices = @transform_4, window_bounds = array<i64: 128, 64>}]} {
    %c0 = arith.constant 0 : index
    %c0_0 = arith.constant 0 : index
    %0 = vector.load %arg1[%c0, %c0_0] : memref<128x32xf32, #tpu.memory_space<vmem>>, vector<128x32xf32>
    %c0_1 = arith.constant 0 : index
    %c0_2 = arith.constant 0 : index
    %1 = vector.load %arg2[%c0_1, %c0_2] : memref<32x64xf32, #tpu.memory_space<vmem>>, vector<32x64xf32>
    %cst = arith.constant dense<0.000000e+00> : vector<128x64xf32>
    %2 = tpu.matmul %0, %1, %cst {dimension_numbers = #tpu.dot_dimension_numbers<[1], [0], [0], [1], [0, 0, 1, 1], [], []>} : vector<128x32xf32>, vector<32x64xf32>, vector<128x64xf32> -> vector<128x64xf32>
    %c0_3 = arith.constant 0 : index
    %c0_4 = arith.constant 0 : index
    %3 = vector.load %arg3[%c0_3, %c0_4] : memref<1x64xf32, #tpu.memory_space<vmem>>, vector<1x64xf32>
    %4 = vector.broadcast %3 : vector<1x64xf32> to vector<128x64xf32>
    %5 = arith.mulf %2, %4 : vector<128x64xf32>
    %c0_5 = arith.constant 0 : index
    %c0_6 = arith.constant 0 : index
    %6 = vector.load %arg4[%c0_5, %c0_6] : memref<1x64xf32, #tpu.memory_space<vmem>>, vector<1x64xf32>
    %7 = vector.broadcast %6 : vector<1x64xf32> to vector<128x64xf32>
    %8 = arith.addf %5, %7 : vector<128x64xf32>
    %cst_7 = arith.constant 0.000000e+00 : f32
    %9 = vector.broadcast %cst_7 : f32 to vector<128x64xf32>
    %10 = arith.maximumf %8, %9 : vector<128x64xf32>
    %c0_8 = arith.constant 0 : index
    %c0_9 = arith.constant 0 : index
    %11 = vector.load %arg5[%c0_8, %c0_9] : memref<128x64xf32, #tpu.memory_space<vmem>>, vector<128x64xf32>
    tpu.vector_store %arg5[%c0_8, %c0_9], %10 {strides = array<i32>} : memref<128x64xf32, #tpu.memory_space<vmem>>, vector<128x64xf32>,
    return
  }
  func.func @transform_0(%arg0: i32) -> (i32, i32) {
    %c0_i32 = arith.constant 0 : i32
    %c0_i32_0 = arith.constant 0 : i32
    return %arg0, %c0_i32 : i32, i32
  }
  func.func @transform_1(%arg0: i32) -> (i32, i32) {
    %c0_i32 = arith.constant 0 : i32
    %c0_i32_0 = arith.constant 0 : i32
    %c0_i32_1 = arith.constant 0 : i32
    return %c0_i32, %c0_i32_0 : i32, i32
  }
  func.func @transform_2(%arg0: i32) -> (i32, i32) {
    %c0_i32 = arith.constant 0 : i32
    %c0_i32_0 = arith.constant 0 : i32
    %c0_i32_1 = arith.constant 0 : i32
    return %c0_i32, %c0_i32_0 : i32, i32
  }
  func.func @transform_3(%arg0: i32) -> (i32, i32) {
    %c0_i32 = arith.constant 0 : i32
    %c0_i32_0 = arith.constant 0 : i32
    %c0_i32_1 = arith.constant 0 : i32
    return %c0_i32, %c0_i32_0 : i32, i32
  }
  func.func @transform_4(%arg0: i32) -> (i32, i32) {
    %c0_i32 = arith.constant 0 : i32
    %c0_i32_0 = arith.constant 0 : i32
    return %arg0, %c0_i32 : i32, i32
  }
}

module attributes {stable_mosaic.version = 11 : i64} {
  func.func @_bn_stats_kernel(%arg0: i32, %arg1: memref<128x32xf32, #tpu.memory_space<vmem>>, %arg2: memref<32x64xf32, #tpu.memory_space<vmem>>, %arg3: memref<1x64xf32, #tpu.memory_space<vmem>>, %arg4: memref<1x64xf32, #tpu.memory_space<vmem>>) attributes {dimension_semantics = [#tpu.dimension_semantics<arbitrary>], iteration_bounds = array<i64: 1>, scalar_prefetch = 0 : i64, scratch_operands = 0 : i64, tpu.core_type = #tpu.core_type<tc>, window_params = [{transform_indices = @transform_0, window_bounds = array<i64: 128, 32>}, {pipeline_mode = #tpu.pipeline_mode<synchronous>, transform_indices = @transform_1, window_bounds = array<i64: 32, 64>}, {pipeline_mode = #tpu.pipeline_mode<synchronous>, transform_indices = @transform_2, window_bounds = array<i64: 1, 64>}, {pipeline_mode = #tpu.pipeline_mode<synchronous>, transform_indices = @transform_3, window_bounds = array<i64: 1, 64>}]} {
    %c0_i32 = arith.constant 0 : i32
    %0 = arith.cmpi eq, %arg0, %c0_i32 : i32
    %1 = arith.extui %0 : i1 to i32
    %c0_i32_0 = arith.constant 0 : i32
    %2 = arith.cmpi ne, %1, %c0_i32_0 : i32
    scf.if %2 {
      %cst_15 = arith.constant 0.000000e+00 : f32
      %16 = vector.broadcast %cst_15 : f32 to vector<1x64xf32>
      %c0_16 = arith.constant 0 : index
      %c0_17 = arith.constant 0 : index
      %17 = vector.load %arg3[%c0_16, %c0_17] : memref<1x64xf32, #tpu.memory_space<vmem>>, vector<1x64xf32>
      tpu.vector_store %arg3[%c0_16, %c0_17], %16 {strides = array<i32>} : memref<1x64xf32, #tpu.memory_space<vmem>>, vector<1x64xf32>,
      %cst_18 = arith.constant 0.000000e+00 : f32
      %18 = vector.broadcast %cst_18 : f32 to vector<1x64xf32>
      %c0_19 = arith.constant 0 : index
      %c0_20 = arith.constant 0 : index
      %19 = vector.load %arg4[%c0_19, %c0_20] : memref<1x64xf32, #tpu.memory_space<vmem>>, vector<1x64xf32>
      tpu.vector_store %arg4[%c0_19, %c0_20], %18 {strides = array<i32>} : memref<1x64xf32, #tpu.memory_space<vmem>>, vector<1x64xf32>,
    } else {
    }
    %c0 = arith.constant 0 : index
    %c0_1 = arith.constant 0 : index
    %3 = vector.load %arg1[%c0, %c0_1] : memref<128x32xf32, #tpu.memory_space<vmem>>, vector<128x32xf32>
    %c0_2 = arith.constant 0 : index
    %c0_3 = arith.constant 0 : index
    %4 = vector.load %arg2[%c0_2, %c0_3] : memref<32x64xf32, #tpu.memory_space<vmem>>, vector<32x64xf32>
    %cst = arith.constant dense<0.000000e+00> : vector<128x64xf32>
    %5 = tpu.matmul %3, %4, %cst {dimension_numbers = #tpu.dot_dimension_numbers<[1], [0], [0], [1], [0, 0, 1, 1], [], []>} : vector<128x32xf32>, vector<32x64xf32>, vector<128x64xf32> -> vector<128x64xf32>
    %cst_4 = arith.constant 1.000000e+00 : f32
    %6 = vector.broadcast %cst_4 : f32 to vector<1x128xf32>
    %c0_5 = arith.constant 0 : index
    %c0_6 = arith.constant 0 : index
    %7 = vector.load %arg3[%c0_5, %c0_6] : memref<1x64xf32, #tpu.memory_space<vmem>>, vector<1x64xf32>
    %cst_7 = arith.constant dense<0.000000e+00> : vector<1x64xf32>
    %8 = tpu.matmul %6, %5, %cst_7 {dimension_numbers = #tpu.dot_dimension_numbers<[1], [0], [0], [1], [0, 0, 1, 1], [], []>} : vector<1x128xf32>, vector<128x64xf32>, vector<1x64xf32> -> vector<1x64xf32>
    %9 = arith.addf %7, %8 : vector<1x64xf32>
    %c0_8 = arith.constant 0 : index
    %c0_9 = arith.constant 0 : index
    %10 = vector.load %arg3[%c0_8, %c0_9] : memref<1x64xf32, #tpu.memory_space<vmem>>, vector<1x64xf32>
    tpu.vector_store %arg3[%c0_8, %c0_9], %9 {strides = array<i32>} : memref<1x64xf32, #tpu.memory_space<vmem>>, vector<1x64xf32>,
    %c0_10 = arith.constant 0 : index
    %c0_11 = arith.constant 0 : index
    %11 = vector.load %arg4[%c0_10, %c0_11] : memref<1x64xf32, #tpu.memory_space<vmem>>, vector<1x64xf32>
    %12 = arith.mulf %5, %5 : vector<128x64xf32>
    %cst_12 = arith.constant dense<0.000000e+00> : vector<1x64xf32>
    %13 = tpu.matmul %6, %12, %cst_12 {dimension_numbers = #tpu.dot_dimension_numbers<[1], [0], [0], [1], [0, 0, 1, 1], [], []>} : vector<1x128xf32>, vector<128x64xf32>, vector<1x64xf32> -> vector<1x64xf32>
    %14 = arith.addf %11, %13 : vector<1x64xf32>
    %c0_13 = arith.constant 0 : index
    %c0_14 = arith.constant 0 : index
    %15 = vector.load %arg4[%c0_13, %c0_14] : memref<1x64xf32, #tpu.memory_space<vmem>>, vector<1x64xf32>
    tpu.vector_store %arg4[%c0_13, %c0_14], %14 {strides = array<i32>} : memref<1x64xf32, #tpu.memory_space<vmem>>, vector<1x64xf32>,
    return
  }
  func.func @transform_0(%arg0: i32) -> (i32, i32) {
    %c0_i32 = arith.constant 0 : i32
    %c0_i32_0 = arith.constant 0 : i32
    return %arg0, %c0_i32 : i32, i32
  }
  func.func @transform_1(%arg0: i32) -> (i32, i32) {
    %c0_i32 = arith.constant 0 : i32
    %c0_i32_0 = arith.constant 0 : i32
    %c0_i32_1 = arith.constant 0 : i32
    return %c0_i32, %c0_i32_0 : i32, i32
  }
  func.func @transform_2(%arg0: i32) -> (i32, i32) {
    %c0_i32 = arith.constant 0 : i32
    %c0_i32_0 = arith.constant 0 : i32
    %c0_i32_1 = arith.constant 0 : i32
    return %c0_i32, %c0_i32_0 : i32, i32
  }
  func.func @transform_3(%arg0: i32) -> (i32, i32) {
    %c0_i32 = arith.constant 0 : i32
    %c0_i32_0 = arith.constant 0 : i32
    %c0_i32_1 = arith.constant 0 : i32
    return %c0_i32, %c0_i32_0 : i32, i32
  }
}

</mosaic_0001>

<llo_original>
// kernel: conv1d_forward.3
$region0: #{conv1d_forward.3}
  #allocation0 [shape = 'u32[]', space=smem, size = 0x4, offset = 0x4, fixed_abs, tag = 'smem constant byte address 0x4 - core index']
  #allocation1 [shape = 'u32[144,128]{1,0:T(1,128)}', space=vmem, size = 0x12000, scoped, tag = 'internal scratch']
  %s0 = inlined_call_operand.vmem [shape: f32[128,32], index: 0, kind: input, shape index: {}]
  %s1 = inlined_call_operand.vmem [shape: f32[32,64], index: 1, kind: input, shape index: {}]
  %s2 = inlined_call_operand.vmem [shape: f32[1,64], index: 2, kind: input, shape index: {}]
  %s3 = inlined_call_operand.vmem [shape: f32[1,64], index: 3, kind: input, shape index: {}]
  %s4 = inlined_call_operand.vmem [shape: f32[128,64], index: 4, kind: output, shape index: {}]
  %s5 = sld [smem:[#allocation0]]
  $region26: #{conv1d_forward.3} parent=0
    _
  %s7 = ssub.s32 1, %s5
  %s8 = scalar_select 0, %s7, %s5
  // Predicated region
  $region2: #{conv1d_forward.3} parent=0 // pred_check
    _
  $region3: #{conv1d_forward.3} parent=0 // pred_check_branch
    %10 = sbr.rel (0) target = $region5
  $region4: #{conv1d_forward.3} parent=0 // pred_region
    _
  $region5: #{conv1d_forward.3} parent=0 // pred_fallthru
    _
  // Predicated region
  $region6: #{conv1d_forward.3} parent=0 // pred_check
    _
  $region7: #{conv1d_forward.3} parent=0 // pred_check_branch
    %12 = sbr.rel (0) target = $region9
  $region8: #{conv1d_forward.3} parent=0 // pred_region
    _
  $region9: #{conv1d_forward.3} parent=0 // pred_fallthru
    _
  // Predicated region
  $region10: #{conv1d_forward.3} parent=0 // pred_check
    _
  $region11: #{conv1d_forward.3} parent=0 // pred_check_branch
    %14 = sbr.rel (0) target = $region13
  $region12: #{conv1d_forward.3} parent=0 // pred_region
    _
  $region13: #{conv1d_forward.3} parent=0 // pred_fallthru
    _
  // Predicated region
  $region14: #{conv1d_forward.3} parent=0 // pred_check
    _
  $region15: #{conv1d_forward.3} parent=0 // pred_check_branch
    %16 = sbr.rel (0) target = $region17
  $region16: #{conv1d_forward.3} parent=0 // pred_region
    _
  $region17: #{conv1d_forward.3} parent=0 // pred_fallthru
    _
  %v17 = vld [vmem:[%s0] sm:$0xff]
  %v18 = vld [vmem:[%s0 + $0x8] sm:$0xff]
  %v19 = vld [vmem:[%s0 + $0x10] sm:$0xff]
  %v20 = vld [vmem:[%s0 + $0x18] sm:$0xff]
  %v21 = vld [vmem:[%s0 + $0x20] sm:$0xff]
  %v22 = vld [vmem:[%s0 + $0x28] sm:$0xff]
  %v23 = vld [vmem:[%s0 + $0x30] sm:$0xff]
  %v24 = vld [vmem:[%s0 + $0x38] sm:$0xff]
  %v25 = vld [vmem:[%s0 + $0x40] sm:$0xff]
  %v26 = vld [vmem:[%s0 + $0x48] sm:$0xff]
  %v27 = vld [vmem:[%s0 + $0x50] sm:$0xff]
  %v28 = vld [vmem:[%s0 + $0x58] sm:$0xff]
  %v29 = vld [vmem:[%s0 + $0x60] sm:$0xff]
  %v30 = vld [vmem:[%s0 + $0x68] sm:$0xff]
  %v31 = vld [vmem:[%s0 + $0x70] sm:$0xff]
  %v32 = vld [vmem:[%s0 + $0x78] sm:$0xff]
  %v33 = vld [vmem:[%s1] sm:$0xff]
  %v34 = vld [vmem:[%s1 + $0x8] sm:$0xff]
  %v35 = vld [vmem:[%s1 + $0x10] sm:$0xff]
  %v36 = vld [vmem:[%s1 + $0x18] sm:$0xff]
  %vm37 = vcmask 261120
  %v39 = vsel %vm37, %v17, 0
  %v42 = vsel %vm37, %v18, 0
  %v45 = vsel %vm37, %v19, 0
  %v48 = vsel %vm37, %v20, 0
  %v51 = vsel %vm37, %v21, 0
  %v54 = vsel %vm37, %v22, 0
  %v57 = vsel %vm37, %v23, 0
  %v60 = vsel %vm37, %v24, 0
  %v63 = vsel %vm37, %v25, 0
  %v66 = vsel %vm37, %v26, 0
  %v69 = vsel %vm37, %v27, 0
  %v72 = vsel %vm37, %v28, 0
  %v75 = vsel %vm37, %v29, 0
  %v78 = vsel %vm37, %v30, 0
  %v81 = vsel %vm37, %v31, 0
  %v84 = vsel %vm37, %v32, 0
  %86 = vmatprep.subr.mxu0 0.0
  %87 = vmatpush1.msra.mxu0 %v33
  %88 = vmatprep.subr.mxu0 0.0
  %89 = vmatpush1.msra.mxu0 %v34
  %90 = vmatprep.subr.mxu0 0.0
  %91 = vmatpush1.msra.mxu0 %v35
  %92 = vmatprep.subr.mxu0 0.0
  %93 = vmatpush1.msra.mxu0 %v36
  %94 = vmatprep.subr.mxu0 0.0
  %95 = vmatpush1.msra.mxu0 0.0
  %96 = vmatprep.subr.mxu0 0.0
  %97 = vmatpush1.msra.mxu0 0.0
  %98 = vmatprep.subr.mxu0 0.0
  %99 = vmatpush1.msra.mxu0 0.0
  %100 = vmatprep.subr.mxu0 0.0
  %101 = vmatpush1.msra.mxu0 0.0
  %102 = vmatprep.subr.mxu0 0.0
  %103 = vmatpush1.msra.mxu0 0.0
  %104 = vmatprep.subr.mxu0 0.0
  %105 = vmatpush1.msra.mxu0 0.0
  %106 = vmatprep.subr.mxu0 0.0
  %107 = vmatpush1.msra.mxu0 0.0
  %108 = vmatprep.subr.mxu0 0.0
  %109 = vmatpush1.msra.mxu0 0.0
  %110 = vmatprep.subr.mxu0 0.0
  %111 = vmatpush1.msra.mxu0 0.0
  %112 = vmatprep.subr.mxu0 0.0
  %113 = vmatpush1.msra.mxu0 0.0
  %114 = vmatprep.subr.mxu0 0.0
  %115 = vmatpush1.msra.mxu0 0.0
  %116 = vmatprep.subr.mxu0 0.0
  %117 = vmatpush1.msra.mxu0 0.0
  %118 = vmatprep.subr.mxu0 0.0
  %119 = vmatpush1.msra.mxu0 0.0
  %120 = vmatprep.subr.mxu0 0.0
  %121 = vmatpush1.msra.mxu0 0.0
  %122 = vmatprep.subr.mxu0 0.0
  %123 = vmatpush1.msra.mxu0 0.0
  %124 = vmatprep.subr.mxu0 0.0
  %125 = vmatpush1.msra.mxu0 0.0
  %126 = vmatprep.subr.mxu0 0.0
  %127 = vmatpush1.msra.mxu0 0.0
  %128 = vmatprep.subr.mxu0 0.0
  %129 = vmatpush1.msra.mxu0 0.0
  %130 = vmatprep.subr.mxu0 0.0
  %131 = vmatpush1.msra.mxu0 0.0
  %132 = vmatprep.subr.mxu0 0.0
  %133 = vmatpush1.msra.mxu0 0.0
  %134 = vmatprep.subr.mxu0 0.0
  %135 = vmatpush1.msra.mxu0 0.0
  %136 = vmatprep.subr.mxu0 0.0
  %137 = vmatpush1.msra.mxu0 0.0
  %138 = vmatprep.subr.mxu0 0.0
  %139 = vmatpush1.msra.mxu0 0.0
  %140 = vmatprep.subr.mxu0 0.0
  %141 = vmatpush1.msra.mxu0 0.0
  %142 = vmatprep.subr.mxu0 0.0
  %143 = vmatpush1.msra.mxu0 0.0
  %144 = vmatprep.subr.mxu0 0.0
  %145 = vmatpush1.msra.mxu0 0.0
  %146 = vmatprep.subr.mxu0 0.0
  %147 = vmatpush1.msra.mxu0 0.0
  %148 = vmatprep.subr.mxu0 0.0
  %149 = vmatpush1.msra.mxu0 0.0
  %150 = vmatprep.mubr.f32.mxu0 0.0
  %151 = vmatmul.mubr.f32.gmra.mrb[0].mxu0 %v39
  %v152 = vpop.f32.mrb[0].mxu0
  %v153 = vadd.f32 0.0, %v152
  %v154 = vpop.f32.mrb[0].mxu0
  %155 = vmatprep.mubr.f32.mxu0 0.0
  %156 = vmatmul.mubr.f32.gmra.mrb[0].mxu0 %v42
  %v157 = vpop.f32.mrb[0].mxu0
  %v158 = vadd.f32 0.0, %v157
  %v159 = vpop.f32.mrb[0].mxu0
  %160 = vmatprep.mubr.f32.mxu0 0.0
  %161 = vmatmul.mubr.f32.gmra.mrb[0].mxu0 %v45
  %v162 = vpop.f32.mrb[0].mxu0
  %v163 = vadd.f32 0.0, %v162
  %v164 = vpop.f32.mrb[0].mxu0
  %165 = vmatprep.mubr.f32.mxu0 0.0
  %166 = vmatmul.mubr.f32.gmra.mrb[0].mxu0 %v48
  %v167 = vpop.f32.mrb[0].mxu0
  %v168 = vadd.f32 0.0, %v167
  %v169 = vpop.f32.mrb[0].mxu0
  %170 = vmatprep.mubr.f32.mxu0 0.0
  %171 = vmatmul.mubr.f32.gmra.mrb[0].mxu0 %v51
  %v172 = vpop.f32.mrb[0].mxu0
  %v173 = vadd.f32 0.0, %v172
  %v174 = vpop.f32.mrb[0].mxu0
  %175 = vmatprep.mubr.f32.mxu0 0.0
  %176 = vmatmul.mubr.f32.gmra.mrb[0].mxu0 %v54
  %v177 = vpop.f32.mrb[0].mxu0
  %v178 = vadd.f32 0.0, %v177
  %v179 = vpop.f32.mrb[0].mxu0
  %180 = vmatprep.mubr.f32.mxu0 0.0
  %181 = vmatmul.mubr.f32.gmra.mrb[0].mxu0 %v57
  %v182 = vpop.f32.mrb[0].mxu0
  %v183 = vadd.f32 0.0, %v182
  %v184 = vpop.f32.mrb[0].mxu0
  %185 = vmatprep.mubr.f32.mxu0 0.0
  %186 = vmatmul.mubr.f32.gmra.mrb[0].mxu0 %v60
  %v187 = vpop.f32.mrb[0].mxu0
  %v188 = vadd.f32 0.0, %v187
  %v189 = vpop.f32.mrb[0].mxu0
  %190 = vmatprep.mubr.f32.mxu0 0.0
  %191 = vmatmul.mubr.f32.gmra.mrb[0].mxu0 %v63
  %v192 = vpop.f32.mrb[0].mxu0
  %v193 = vadd.f32 0.0, %v192
  %v194 = vpop.f32.mrb[0].mxu0
  %195 = vmatprep.mubr.f32.mxu0 0.0
  %196 = vmatmul.mubr.f32.gmra.mrb[0].mxu0 %v66
  %v197 = vpop.f32.mrb[0].mxu0
  %v198 = vadd.f32 0.0, %v197
  %v199 = vpop.f32.mrb[0].mxu0
  %200 = vmatprep.mubr.f32.mxu0 0.0
  %201 = vmatmul.mubr.f32.gmra.mrb[0].mxu0 %v69
  %v202 = vpop.f32.mrb[0].mxu0
  %v203 = vadd.f32 0.0, %v202
  %v204 = vpop.f32.mrb[0].mxu0
  %205 = vmatprep.mubr.f32.mxu0 0.0
  %206 = vmatmul.mubr.f32.gmra.mrb[0].mxu0 %v72
  %v207 = vpop.f32.mrb[0].mxu0
  %v208 = vadd.f32 0.0, %v207
  %v209 = vpop.f32.mrb[0].mxu0
  %210 = vmatprep.mubr.f32.mxu0 0.0
  %211 = vmatmul.mubr.f32.gmra.mrb[0].mxu0 %v75
  %v212 = vpop.f32.mrb[0].mxu0
  %v213 = vadd.f32 0.0, %v212
  %v214 = vpop.f32.mrb[0].mxu0
  %215 = vmatprep.mubr.f32.mxu0 0.0
  %216 = vmatmul.mubr.f32.gmra.mrb[0].mxu0 %v78
  %v217 = vpop.f32.mrb[0].mxu0
  %v218 = vadd.f32 0.0, %v217
  %v219 = vpop.f32.mrb[0].mxu0
  %220 = vmatprep.mubr.f32.mxu0 0.0
  %221 = vmatmul.mubr.f32.gmra.mrb[0].mxu0 %v81
  %v222 = vpop.f32.mrb[0].mxu0
  %v223 = vadd.f32 0.0, %v222
  %v224 = vpop.f32.mrb[0].mxu0
  %225 = vmatprep.mubr.f32.mxu0 0.0
  %226 = vmatmul.mubr.f32.gmra.mrb[0].mxu0 %v84
  %v227 = vpop.f32.mrb[0].mxu0
  %v228 = vadd.f32 0.0, %v227
  %v229 = vpop.f32.mrb[0].mxu0
  %230 = vdwg.mxu0
  %v231 = vld [vmem:[%s2] sm:$0x1]
  %v233 = vlaneseq
  %v234 = vshrl.u32 %v233, 7
  %v235 = vsub.s32 0, %v234
  %v236 = vrot.slane %v231, %v235
  %v238 = vmul.f32 %v153, %v236
  %v239 = vmul.f32 %v158, %v236
  %v240 = vmul.f32 %v163, %v236
  %v241 = vmul.f32 %v168, %v236
  %v242 = vmul.f32 %v173, %v236
  %v243 = vmul.f32 %v178, %v236
  %v244 = vmul.f32 %v183, %v236
  %v245 = vmul.f32 %v188, %v236
  %v246 = vmul.f32 %v193, %v236
  %v247 = vmul.f32 %v198, %v236
  %v248 = vmul.f32 %v203, %v236
  %v249 = vmul.f32 %v208, %v236
  %v250 = vmul.f32 %v213, %v236
  %v251 = vmul.f32 %v218, %v236
  %v252 = vmul.f32 %v223, %v236
  %v253 = vmul.f32 %v228, %v236
  %v254 = vld [vmem:[%s3] sm:$0x1]
  %v256 = vlaneseq
  %v257 = vshrl.u32 %v256, 7
  %v258 = vsub.s32 0, %v257
  %v259 = vrot.slane %v254, %v258
  %v261 = vadd.f32 %v238, %v259
  %v262 = vadd.f32 %v239, %v259
  %v263 = vadd.f32 %v240, %v259
  %v264 = vadd.f32 %v241, %v259
  %v265 = vadd.f32 %v242, %v259
  %v266 = vadd.f32 %v243, %v259
  %v267 = vadd.f32 %v244, %v259
  %v268 = vadd.f32 %v245, %v259
  %v269 = vadd.f32 %v246, %v259
  %v270 = vadd.f32 %v247, %v259
  %v271 = vadd.f32 %v248, %v259
  %v272 = vadd.f32 %v249, %v259
  %v273 = vadd.f32 %v250, %v259
  %v274 = vadd.f32 %v251, %v259
  %v275 = vadd.f32 %v252, %v259
  %v276 = vadd.f32 %v253, %v259
  %v277 = vmax.f32 %v261, 0.0
  %v278 = vmax.f32 %v262, 0.0
  %v279 = vmax.f32 %v263, 0.0
  %v280 = vmax.f32 %v264, 0.0
  %v281 = vmax.f32 %v265, 0.0
  %v282 = vmax.f32 %v266, 0.0
  %v283 = vmax.f32 %v267, 0.0
  %v284 = vmax.f32 %v268, 0.0
  %v285 = vmax.f32 %v269, 0.0
  %v286 = vmax.f32 %v270, 0.0
  %v287 = vmax.f32 %v271, 0.0
  %v288 = vmax.f32 %v272, 0.0
  %v289 = vmax.f32 %v273, 0.0
  %v290 = vmax.f32 %v274, 0.0
  %v291 = vmax.f32 %v275, 0.0
  %v292 = vmax.f32 %v276, 0.0
  %vm293 = vcmask 523264
  %294 = vst.msk [vmem:[%s4] sm:$0xff] %vm293, %v277
  %295 = vst.msk [vmem:[%s4 + $0x8] sm:$0xff] %vm293, %v278
  %296 = vst.msk [vmem:[%s4 + $0x10] sm:$0xff] %vm293, %v279
  %297 = vst.msk [vmem:[%s4 + $0x18] sm:$0xff] %vm293, %v280
  %298 = vst.msk [vmem:[%s4 + $0x20] sm:$0xff] %vm293, %v281
  %299 = vst.msk [vmem:[%s4 + $0x28] sm:$0xff] %vm293, %v282
  %300 = vst.msk [vmem:[%s4 + $0x30] sm:$0xff] %vm293, %v283
  %301 = vst.msk [vmem:[%s4 + $0x38] sm:$0xff] %vm293, %v284
  %302 = vst.msk [vmem:[%s4 + $0x40] sm:$0xff] %vm293, %v285
  %303 = vst.msk [vmem:[%s4 + $0x48] sm:$0xff] %vm293, %v286
  %304 = vst.msk [vmem:[%s4 + $0x50] sm:$0xff] %vm293, %v287
  %305 = vst.msk [vmem:[%s4 + $0x58] sm:$0xff] %vm293, %v288
  %306 = vst.msk [vmem:[%s4 + $0x60] sm:$0xff] %vm293, %v289
  %307 = vst.msk [vmem:[%s4 + $0x68] sm:$0xff] %vm293, %v290
  %308 = vst.msk [vmem:[%s4 + $0x70] sm:$0xff] %vm293, %v291
  %309 = vst.msk [vmem:[%s4 + $0x78] sm:$0xff] %vm293, %v292
  // Predicated region
  $region18: #{conv1d_forward.3} parent=0 // pred_check
    _
  $region19: #{conv1d_forward.3} parent=0 // pred_check_branch
    %311 = sbr.rel (0) target = $region21
  $region20: #{conv1d_forward.3} parent=0 // pred_region
    _
  $region21: #{conv1d_forward.3} parent=0 // pred_fallthru
    _
  // Predicated region
  $region22: #{conv1d_forward.3} parent=0 // pred_check
    _
  $region23: #{conv1d_forward.3} parent=0 // pred_check_branch
    %313 = sbr.rel (0) target = $region25
  $region24: #{conv1d_forward.3} parent=0 // pred_region
    _
  $region25: #{conv1d_forward.3} parent=0 // pred_fallthru
    _

// kernel: conv1d_forward.2
$region0: #{conv1d_forward.2}
  #allocation0 [shape = 'u32[]', space=smem, size = 0x4, offset = 0x4, fixed_abs, tag = 'smem constant byte address 0x4 - core index']
  #allocation1 [shape = 'u32[144,128]{1,0:T(1,128)}', space=vmem, size = 0x12000, scoped, tag = 'internal scratch']
  %s0 = inlined_call_operand.vmem [shape: f32[128,32], index: 0, kind: input, shape index: {}]
  %s1 = inlined_call_operand.vmem [shape: f32[32,64], index: 1, kind: input, shape index: {}]
  %s2 = inlined_call_operand.vmem [shape: f32[1,64], index: 2, kind: output, shape index: {0}]
  %s3 = inlined_call_operand.vmem [shape: f32[1,64], index: 3, kind: output, shape index: {1}]
  %4 = xla_tuple %s2, %s3
  %s5 = sld [smem:[#allocation0]]
  $region30: #{conv1d_forward.2} parent=0
    _
  %s7 = ssub.s32 1, %s5
  %s8 = scalar_select 0, %s7, %s5
  // Predicated region
  $region2: #{conv1d_forward.2} parent=0 // pred_check
    _
  $region3: #{conv1d_forward.2} parent=0 // pred_check_branch
    %10 = sbr.rel (0) target = $region5
  $region4: #{conv1d_forward.2} parent=0 // pred_region
    _
  $region5: #{conv1d_forward.2} parent=0 // pred_fallthru
    _
  // Predicated region
  $region6: #{conv1d_forward.2} parent=0 // pred_check
    _
  $region7: #{conv1d_forward.2} parent=0 // pred_check_branch
    %12 = sbr.rel (0) target = $region9
  $region8: #{conv1d_forward.2} parent=0 // pred_region
    _
  $region9: #{conv1d_forward.2} parent=0 // pred_fallthru
    _
  %p13 = scmp.eq.s32.totalorder 0, 0
  // Predicated region
  $region10: #{conv1d_forward.2} parent=0 // pred_check
    %p14 = pneg %p13
  $region11: #{conv1d_forward.2} parent=0 // pred_check_branch
    %16 = sbr.rel (%p14) target = $region13
  $region12: #{conv1d_forward.2} parent=0 // pred_region
    %vm17 = vcmask 516096
    %18 = vst.msk [vmem:[%s2] sm:$0x1] %vm17, 0.0
    %19 = vst.msk [vmem:[%s3] sm:$0x1] %vm17, 0.0
  $region13: #{conv1d_forward.2} parent=0 // pred_fallthru
    _
  %v20 = vld [vmem:[%s0] sm:$0xff]
  %v21 = vld [vmem:[%s0 + $0x8] sm:$0xff]
  %v22 = vld [vmem:[%s0 + $0x10] sm:$0xff]
  %v23 = vld [vmem:[%s0 + $0x18] sm:$0xff]
  %v24 = vld [vmem:[%s0 + $0x20] sm:$0xff]
  %v25 = vld [vmem:[%s0 + $0x28] sm:$0xff]
  %v26 = vld [vmem:[%s0 + $0x30] sm:$0xff]
  %v27 = vld [vmem:[%s0 + $0x38] sm:$0xff]
  %v28 = vld [vmem:[%s0 + $0x40] sm:$0xff]
  %v29 = vld [vmem:[%s0 + $0x48] sm:$0xff]
  %v30 = vld [vmem:[%s0 + $0x50] sm:$0xff]
  %v31 = vld [vmem:[%s0 + $0x58] sm:$0xff]
  %v32 = vld [vmem:[%s0 + $0x60] sm:$0xff]
  %v33 = vld [vmem:[%s0 + $0x68] sm:$0xff]
  %v34 = vld [vmem:[%s0 + $0x70] sm:$0xff]
  %v35 = vld [vmem:[%s0 + $0x78] sm:$0xff]
  %v36 = vld [vmem:[%s1] sm:$0xff]
  %v37 = vld [vmem:[%s1 + $0x8] sm:$0xff]
  %v38 = vld [vmem:[%s1 + $0x10] sm:$0xff]
  %v39 = vld [vmem:[%s1 + $0x18] sm:$0xff]
  %vm40 = vcmask 261120
  %v42 = vsel %vm40, %v20, 0
  %v45 = vsel %vm40, %v21, 0
  %v48 = vsel %vm40, %v22, 0
  %v51 = vsel %vm40, %v23, 0
  %v54 = vsel %vm40, %v24, 0
  %v57 = vsel %vm40, %v25, 0
  %v60 = vsel %vm40, %v26, 0
  %v63 = vsel %vm40, %v27, 0
  %v66 = vsel %vm40, %v28, 0
  %v69 = vsel %vm40, %v29, 0
  %v72 = vsel %vm40, %v30, 0
  %v75 = vsel %vm40, %v31, 0
  %v78 = vsel %vm40, %v32, 0
  %v81 = vsel %vm40, %v33, 0
  %v84 = vsel %vm40, %v34, 0
  %v87 = vsel %vm40, %v35, 0
  %89 = vmatprep.subr.mxu0 0.0
  %90 = vmatpush1.msra.mxu0 %v36
  %91 = vmatprep.subr.mxu0 0.0
  %92 = vmatpush1.msra.mxu0 %v37
  %93 = vmatprep.subr.mxu0 0.0
  %94 = vmatpush1.msra.mxu0 %v38
  %95 = vmatprep.subr.mxu0 0.0
  %96 = vmatpush1.msra.mxu0 %v39
  %97 = vmatprep.subr.mxu0 0.0
  %98 = vmatpush1.msra.mxu0 0.0
  %99 = vmatprep.subr.mxu0 0.0
  %100 = vmatpush1.msra.mxu0 0.0
  %101 = vmatprep.subr.mxu0 0.0
  %102 = vmatpush1.msra.mxu0 0.0
  %103 = vmatprep.subr.mxu0 0.0
  %104 = vmatpush1.msra.mxu0 0.0
  %105 = vmatprep.subr.mxu0 0.0
  %106 = vmatpush1.msra.mxu0 0.0
  %107 = vmatprep.subr.mxu0 0.0
  %108 = vmatpush1.msra.mxu0 0.0
  %109 = vmatprep.subr.mxu0 0.0
  %110 = vmatpush1.msra.mxu0 0.0
  %111 = vmatprep.subr.mxu0 0.0
  %112 = vmatpush1.msra.mxu0 0.0
  %113 = vmatprep.subr.mxu0 0.0
  %114 = vmatpush1.msra.mxu0 0.0
  %115 = vmatprep.subr.mxu0 0.0
  %116 = vmatpush1.msra.mxu0 0.0
  %117 = vmatprep.subr.mxu0 0.0
  %118 = vmatpush1.msra.mxu0 0.0
  %119 = vmatprep.subr.mxu0 0.0
  %120 = vmatpush1.msra.mxu0 0.0
  %121 = vmatprep.subr.mxu0 0.0
  %122 = vmatpush1.msra.mxu0 0.0
  %123 = vmatprep.subr.mxu0 0.0
  %124 = vmatpush1.msra.mxu0 0.0
  %125 = vmatprep.subr.mxu0 0.0
  %126 = vmatpush1.msra.mxu0 0.0
  %127 = vmatprep.subr.mxu0 0.0
  %128 = vmatpush1.msra.mxu0 0.0
  %129 = vmatprep.subr.mxu0 0.0
  %130 = vmatpush1.msra.mxu0 0.0
  %131 = vmatprep.subr.mxu0 0.0
  %132 = vmatpush1.msra.mxu0 0.0
  %133 = vmatprep.subr.mxu0 0.0
  %134 = vmatpush1.msra.mxu0 0.0
  %135 = vmatprep.subr.mxu0 0.0
  %136 = vmatpush1.msra.mxu0 0.0
  %137 = vmatprep.subr.mxu0 0.0
  %138 = vmatpush1.msra.mxu0 0.0
  %139 = vmatprep.subr.mxu0 0.0
  %140 = vmatpush1.msra.mxu0 0.0
  %141 = vmatprep.subr.mxu0 0.0
  %142 = vmatpush1.msra.mxu0 0.0
  %143 = vmatprep.subr.mxu0 0.0
  %144 = vmatpush1.msra.mxu0 0.0
  %145 = vmatprep.subr.mxu0 0.0
  %146 = vmatpush1.msra.mxu0 0.0
  %147 = vmatprep.subr.mxu0 0.0
  %148 = vmatpush1.msra.mxu0 0.0
  %149 = vmatprep.subr.mxu0 0.0
  %150 = vmatpush1.msra.mxu0 0.0
  %151 = vmatprep.subr.mxu0 0.0
  %152 = vmatpush1.msra.mxu0 0.0
  %153 = vmatprep.mubr.f32.mxu0 0.0
  %154 = vmatmul.mubr.f32.gmra.mrb[0].mxu0 %v42
  %v155 = vpop.f32.mrb[0].mxu0
  %v156 = vadd.f32 0.0, %v155
  %v157 = vpop.f32.mrb[0].mxu0
  %158 = vmatprep.mubr.f32.mxu0 0.0
  %159 = vmatmul.mubr.f32.gmra.mrb[0].mxu0 %v45
  %v160 = vpop.f32.mrb[0].mxu0
  %v161 = vadd.f32 0.0, %v160
  %v162 = vpop.f32.mrb[0].mxu0
  %163 = vmatprep.mubr.f32.mxu0 0.0
  %164 = vmatmul.mubr.f32.gmra.mrb[0].mxu0 %v48
  %v165 = vpop.f32.mrb[0].mxu0
  %v166 = vadd.f32 0.0, %v165
  %v167 = vpop.f32.mrb[0].mxu0
  %168 = vmatprep.mubr.f32.mxu0 0.0
  %169 = vmatmul.mubr.f32.gmra.mrb[0].mxu0 %v51
  %v170 = vpop.f32.mrb[0].mxu0
  %v171 = vadd.f32 0.0, %v170
  %v172 = vpop.f32.mrb[0].mxu0
  %173 = vmatprep.mubr.f32.mxu0 0.0
  %174 = vmatmul.mubr.f32.gmra.mrb[0].mxu0 %v54
  %v175 = vpop.f32.mrb[0].mxu0
  %v176 = vadd.f32 0.0, %v175
  %v177 = vpop.f32.mrb[0].mxu0
  %178 = vmatprep.mubr.f32.mxu0 0.0
  %179 = vmatmul.mubr.f32.gmra.mrb[0].mxu0 %v57
  %v180 = vpop.f32.mrb[0].mxu0
  %v181 = vadd.f32 0.0, %v180
  %v182 = vpop.f32.mrb[0].mxu0
  %183 = vmatprep.mubr.f32.mxu0 0.0
  %184 = vmatmul.mubr.f32.gmra.mrb[0].mxu0 %v60
  %v185 = vpop.f32.mrb[0].mxu0
  %v186 = vadd.f32 0.0, %v185
  %v187 = vpop.f32.mrb[0].mxu0
  %188 = vmatprep.mubr.f32.mxu0 0.0
  %189 = vmatmul.mubr.f32.gmra.mrb[0].mxu0 %v63
  %v190 = vpop.f32.mrb[0].mxu0
  %v191 = vadd.f32 0.0, %v190
  %v192 = vpop.f32.mrb[0].mxu0
  %193 = vmatprep.mubr.f32.mxu0 0.0
  %194 = vmatmul.mubr.f32.gmra.mrb[0].mxu0 %v66
  %v195 = vpop.f32.mrb[0].mxu0
  %v196 = vadd.f32 0.0, %v195
  %v197 = vpop.f32.mrb[0].mxu0
  %198 = vmatprep.mubr.f32.mxu0 0.0
  %199 = vmatmul.mubr.f32.gmra.mrb[0].mxu0 %v69
  %v200 = vpop.f32.mrb[0].mxu0
  %v201 = vadd.f32 0.0, %v200
  %v202 = vpop.f32.mrb[0].mxu0
  %203 = vmatprep.mubr.f32.mxu0 0.0
  %204 = vmatmul.mubr.f32.gmra.mrb[0].mxu0 %v72
  %v205 = vpop.f32.mrb[0].mxu0
  %v206 = vadd.f32 0.0, %v205
  %v207 = vpop.f32.mrb[0].mxu0
  %208 = vmatprep.mubr.f32.mxu0 0.0
  %209 = vmatmul.mubr.f32.gmra.mrb[0].mxu0 %v75
  %v210 = vpop.f32.mrb[0].mxu0
  %v211 = vadd.f32 0.0, %v210
  %v212 = vpop.f32.mrb[0].mxu0
  %213 = vmatprep.mubr.f32.mxu0 0.0
  %214 = vmatmul.mubr.f32.gmra.mrb[0].mxu0 %v78
  %v215 = vpop.f32.mrb[0].mxu0
  %v216 = vadd.f32 0.0, %v215
  %v217 = vpop.f32.mrb[0].mxu0
  %218 = vmatprep.mubr.f32.mxu0 0.0
  %219 = vmatmul.mubr.f32.gmra.mrb[0].mxu0 %v81
  %v220 = vpop.f32.mrb[0].mxu0
  %v221 = vadd.f32 0.0, %v220
  %v222 = vpop.f32.mrb[0].mxu0
  %223 = vmatprep.mubr.f32.mxu0 0.0
  %224 = vmatmul.mubr.f32.gmra.mrb[0].mxu0 %v84
  %v225 = vpop.f32.mrb[0].mxu0
  %v226 = vadd.f32 0.0, %v225
  %v227 = vpop.f32.mrb[0].mxu0
  %228 = vmatprep.mubr.f32.mxu0 0.0
  %229 = vmatmul.mubr.f32.gmra.mrb[0].mxu0 %v87
  %v230 = vpop.f32.mrb[0].mxu0
  %v231 = vadd.f32 0.0, %v230
  %v232 = vpop.f32.mrb[0].mxu0
  %233 = vdwg.mxu0
  %v234 = vld [vmem:[%s2] sm:$0x1]
  %235 = vmatprep.subr.mxu0 0.0
  %236 = vmatpush1.msra.mxu0 %v156
  %237 = vmatprep.subr.mxu0 0.0
  %238 = vmatpush1.msra.mxu0 %v161
  %239 = vmatprep.subr.mxu0 0.0
  %240 = vmatpush1.msra.mxu0 %v166
  %241 = vmatprep.subr.mxu0 0.0
  %242 = vmatpush1.msra.mxu0 %v171
  %243 = vmatprep.subr.mxu0 0.0
  %244 = vmatpush1.msra.mxu0 %v176
  %245 = vmatprep.subr.mxu0 0.0
  %246 = vmatpush1.msra.mxu0 %v181
  %247 = vmatprep.subr.mxu0 0.0
  %248 = vmatpush1.msra.mxu0 %v186
  %249 = vmatprep.subr.mxu0 0.0
  %250 = vmatpush1.msra.mxu0 %v191
  %251 = vmatprep.subr.mxu0 0.0
  %252 = vmatpush1.msra.mxu0 %v196
  %253 = vmatprep.subr.mxu0 0.0
  %254 = vmatpush1.msra.mxu0 %v201
  %255 = vmatprep.subr.mxu0 0.0
  %256 = vmatpush1.msra.mxu0 %v206
  %257 = vmatprep.subr.mxu0 0.0
  %258 = vmatpush1.msra.mxu0 %v211
  %259 = vmatprep.subr.mxu0 0.0
  %260 = vmatpush1.msra.mxu0 %v216
  %261 = vmatprep.subr.mxu0 0.0
  %262 = vmatpush1.msra.mxu0 %v221
  %263 = vmatprep.subr.mxu0 0.0
  %264 = vmatpush1.msra.mxu0 %v226
  %265 = vmatprep.subr.mxu0 0.0
  %266 = vmatpush1.msra.mxu0 %v231
  %267 = vmatprep.subr.mxu0 0.0
  %268 = vmatpush1.msra.mxu0 0.0
  %269 = vmatprep.subr.mxu0 0.0
  %270 = vmatpush1.msra.mxu0 0.0
  %271 = vmatprep.subr.mxu0 0.0
  %272 = vmatpush1.msra.mxu0 0.0
  %273 = vmatprep.subr.mxu0 0.0
  %274 = vmatpush1.msra.mxu0 0.0
  %275 = vmatprep.subr.mxu0 0.0
  %276 = vmatpush1.msra.mxu0 0.0
  %277 = vmatprep.subr.mxu0 0.0
  %278 = vmatpush1.msra.mxu0 0.0
  %279 = vmatprep.subr.mxu0 0.0
  %280 = vmatpush1.msra.mxu0 0.0
  %281 = vmatprep.subr.mxu0 0.0
  %282 = vmatpush1.msra.mxu0 0.0
  %283 = vmatprep.subr.mxu0 0.0
  %284 = vmatpush1.msra.mxu0 0.0
  %285 = vmatprep.subr.mxu0 0.0
  %286 = vmatpush1.msra.mxu0 0.0
  %287 = vmatprep.subr.mxu0 0.0
  %288 = vmatpush1.msra.mxu0 0.0
  %289 = vmatprep.subr.mxu0 0.0
  %290 = vmatpush1.msra.mxu0 0.0
  %291 = vmatprep.subr.mxu0 0.0
  %292 = vmatpush1.msra.mxu0 0.0
  %293 = vmatprep.subr.mxu0 0.0
  %294 = vmatpush1.msra.mxu0 0.0
  %295 = vmatprep.subr.mxu0 0.0
  %296 = vmatpush1.msra.mxu0 0.0
  %297 = vmatprep.subr.mxu0 0.0
  %298 = vmatpush1.msra.mxu0 0.0
  %299 = vmatprep.mubr.f32.mxu0 0.0
  %300 = vmatmul.mubr.f32.gmra.mrb[0].mxu0 1.0
  %v301 = vpop.f32.mrb[0].mxu0
  %v302 = vadd.f32 0.0, %v301
  %v303 = vpop.f32.mrb[0].mxu0
  %304 = vdwg.mxu0
  %v305 = vadd.f32 %v234, %v302
  %vm306 = vcmask 516096
  %307 = vst.msk [vmem:[%s2] sm:$0x1] %vm306, %v305
  %v308 = vld [vmem:[%s3] sm:$0x1]
  %v309 = vmul.f32 %v156, %v156
  %v310 = vmul.f32 %v161, %v161
  %v311 = vmul.f32 %v166, %v166
  %v312 = vmul.f32 %v171, %v171
  %v313 = vmul.f32 %v176, %v176
  %v314 = vmul.f32 %v181, %v181
  %v315 = vmul.f32 %v186, %v186
  %v316 = vmul.f32 %v191, %v191
  %v317 = vmul.f32 %v196, %v196
  %v318 = vmul.f32 %v201, %v201
  %v319 = vmul.f32 %v206, %v206
  %v320 = vmul.f32 %v211, %v211
  %v321 = vmul.f32 %v216, %v216
  %v322 = vmul.f32 %v221, %v221
  %v323 = vmul.f32 %v226, %v226
  %v324 = vmul.f32 %v231, %v231
  %325 = vmatprep.subr.mxu0 0.0
  %326 = vmatpush1.msra.mxu0 %v309
  %327 = vmatprep.subr.mxu0 0.0
  %328 = vmatpush1.msra.mxu0 %v310
  %329 = vmatprep.subr.mxu0 0.0
  %330 = vmatpush1.msra.mxu0 %v311
  %331 = vmatprep.subr.mxu0 0.0
  %332 = vmatpush1.msra.mxu0 %v312
  %333 = vmatprep.subr.mxu0 0.0
  %334 = vmatpush1.msra.mxu0 %v313
  %335 = vmatprep.subr.mxu0 0.0
  %336 = vmatpush1.msra.mxu0 %v314
  %337 = vmatprep.subr.mxu0 0.0
  %338 = vmatpush1.msra.mxu0 %v315
  %339 = vmatprep.subr.mxu0 0.0
  %340 = vmatpush1.msra.mxu0 %v316
  %341 = vmatprep.subr.mxu0 0.0
  %342 = vmatpush1.msra.mxu0 %v317
  %343 = vmatprep.subr.mxu0 0.0
  %344 = vmatpush1.msra.mxu0 %v318
  %345 = vmatprep.subr.mxu0 0.0
  %346 = vmatpush1.msra.mxu0 %v319
  %347 = vmatprep.subr.mxu0 0.0
  %348 = vmatpush1.msra.mxu0 %v320
  %349 = vmatprep.subr.mxu0 0.0
  %350 = vmatpush1.msra.mxu0 %v321
  %351 = vmatprep.subr.mxu0 0.0
  %352 = vmatpush1.msra.mxu0 %v322
  %353 = vmatprep.subr.mxu0 0.0
  %354 = vmatpush1.msra.mxu0 %v323
  %355 = vmatprep.subr.mxu0 0.0
  %356 = vmatpush1.msra.mxu0 %v324
  %357 = vmatprep.subr.mxu0 0.0
  %358 = vmatpush1.msra.mxu0 0.0
  %359 = vmatprep.subr.mxu0 0.0
  %360 = vmatpush1.msra.mxu0 0.0
  %361 = vmatprep.subr.mxu0 0.0
  %362 = vmatpush1.msra.mxu0 0.0
  %363 = vmatprep.subr.mxu0 0.0
  %364 = vmatpush1.msra.mxu0 0.0
  %365 = vmatprep.subr.mxu0 0.0
  %366 = vmatpush1.msra.mxu0 0.0
  %367 = vmatprep.subr.mxu0 0.0
  %368 = vmatpush1.msra.mxu0 0.0
  %369 = vmatprep.subr.mxu0 0.0
  %370 = vmatpush1.msra.mxu0 0.0
  %371 = vmatprep.subr.mxu0 0.0
  %372 = vmatpush1.msra.mxu0 0.0
  %373 = vmatprep.subr.mxu0 0.0
  %374 = vmatpush1.msra.mxu0 0.0
  %375 = vmatprep.subr.mxu0 0.0
  %376 = vmatpush1.msra.mxu0 0.0
  %377 = vmatprep.subr.mxu0 0.0
  %378 = vmatpush1.msra.mxu0 0.0
  %379 = vmatprep.subr.mxu0 0.0
  %380 = vmatpush1.msra.mxu0 0.0
  %381 = vmatprep.subr.mxu0 0.0
  %382 = vmatpush1.msra.mxu0 0.0
  %383 = vmatprep.subr.mxu0 0.0
  %384 = vmatpush1.msra.mxu0 0.0
  %385 = vmatprep.subr.mxu0 0.0
  %386 = vmatpush1.msra.mxu0 0.0
  %387 = vmatprep.subr.mxu0 0.0
  %388 = vmatpush1.msra.mxu0 0.0
  %389 = vmatprep.mubr.f32.mxu0 0.0
  %390 = vmatmul.mubr.f32.gmra.mrb[0].mxu0 1.0
  %v391 = vpop.f32.mrb[0].mxu0
  %v392 = vadd.f32 0.0, %v391
  %v393 = vpop.f32.mrb[0].mxu0
  %394 = vdwg.mxu0
  %v395 = vadd.f32 %v308, %v392
  %396 = vst.msk [vmem:[%s3] sm:$0x1] %vm306, %v395
  // Predicated region
  $region14: #{conv1d_forward.2} parent=0 // pred_check
    _
  $region15: #{conv1d_forward.2} parent=0 // pred_check_branch
    %398 = sbr.rel (0) target = $region17
  $region16: #{conv1d_forward.2} parent=0 // pred_region
    _
  $region17: #{conv1d_forward.2} parent=0 // pred_fallthru
    _
  // Predicated region
  $region18: #{conv1d_forward.2} parent=0 // pred_check
    _
  $region19: #{conv1d_forward.2} parent=0 // pred_check_branch
    %400 = sbr.rel (0) target = $region21
  $region20: #{conv1d_forward.2} parent=0 // pred_region
    _
  $region21: #{conv1d_forward.2} parent=0 // pred_fallthru
    _
  // Predicated region
  $region22: #{conv1d_forward.2} parent=0 // pred_check
    _
  $region23: #{conv1d_forward.2} parent=0 // pred_check_branch
    %402 = sbr.rel (0) target = $region25
  $region24: #{conv1d_forward.2} parent=0 // pred_region
    _
  $region25: #{conv1d_forward.2} parent=0 // pred_fallthru
    _
  // Predicated region
  $region26: #{conv1d_forward.2} parent=0 // pred_check
    _
  $region27: #{conv1d_forward.2} parent=0 // pred_check_branch
    %404 = sbr.rel (0) target = $region29
  $region28: #{conv1d_forward.2} parent=0 // pred_region
    _
  $region29: #{conv1d_forward.2} parent=0 // pred_fallthru
    _

</llo_original>
